<compile_context>
chip_gen: v7x
topology: tpu7x:2x2x1
jax: 0.10.0
libtpu: 0.0.40
codegen_flags: <defaults>
</compile_context>

<pallas_src>
from functools import partial

import jax
import jax.numpy as jnp
from jax import lax
from jax.experimental import pallas as pl
from jax.experimental.pallas import tpu as pltpu


# ----------------------------------------------------------------------------
# Kernel
# ----------------------------------------------------------------------------
def _vae_loss_kernel(x_ref, xh_ref, zm_ref, zlv_ref, part_ref, acc_ref, *,
                     likelihood_type, n_row_tiles, tiles_per_split,
                     tile_rows, rows_in_last, acc_rows, needs_skip_guard):
    c = pl.program_id(0)            # core-split index   ("parallel")
    t = pl.program_id(1)            # row-tile index     ("arbitrary")
    nt = pl.num_programs(1)
    g = c * tiles_per_split + t     # global row-tile index

    # ---- init running accumulator once per core-split -----------------------
    @pl.when(t == 0)
    def _init():
        acc_ref[...] = jnp.zeros_like(acc_ref)

    def _elem(xs, hs):
        if likelihood_type == 'mse':
            d = xs - hs
            return d * d
        # 'bce' -- match torch.binary_cross_entropy (log terms clamped at -100).
        # TODO(synk): two logs/element is EUP-bound on v7x; a single-
        # transcendental rewrite would change the clamp semantics, kept as-is.
        log_h = jnp.maximum(jnp.log(hs), -100.0)
        log_1mh = jnp.maximum(jnp.log(1.0 - hs), -100.0)
        return -(xs * log_h + (1.0 - xs) * log_1mh)

    def _accumulate(valid_rows):
        # Fold this tile into the (acc_rows, w_col) f32 accumulator with plain
        # vreg adds (no cross-lane/cross-sublane work in the hot loop).
        # `valid_rows` is a static Python int; masking is only emitted for the
        # single partial chunk of the ragged final tile.
        if acc_rows == 1:           # tiny single-tile case (perf irrelevant)
            xs = x_ref[...].astype(jnp.float32)
            hs = xh_ref[...].astype(jnp.float32)
            contrib = _elem(xs, hs)
            if valid_rows != tile_rows:
                rid = lax.broadcasted_iota(jnp.int32, (tile_rows, 1), 0)
                contrib = jnp.where(rid < valid_rows, contrib, 0.0)
            acc_ref[...] += jnp.sum(contrib, axis=0, keepdims=True)
            return
        for k in range(tile_rows // acc_rows):
            lo = k * acc_rows
            if lo >= valid_rows:
                break                             # fully OOB chunk: skip
            xs = x_ref[lo:lo + acc_rows, :].astype(jnp.float32)
            hs = xh_ref[lo:lo + acc_rows, :].astype(jnp.float32)
            contrib = _elem(xs, hs)
            if lo + acc_rows > valid_rows:        # the one partial chunk: mask
                rid = lax.broadcasted_iota(jnp.int32, (acc_rows, 1), 0)
                contrib = jnp.where(rid < (valid_rows - lo), contrib, 0.0)
            acc_ref[...] += contrib

    ragged = rows_in_last != tile_rows
    if ragged:
        @pl.when(g < n_row_tiles - 1)
        def _full_tiles():
            _accumulate(tile_rows)

        @pl.when(g == n_row_tiles - 1)
        def _tail_tile():
            _accumulate(rows_in_last)
    elif needs_skip_guard:
        # Skip the duplicated (index-clamped) tiles that appear when the tile
        # count does not split evenly across the parallel axis.
        @pl.when(g < n_row_tiles)
        def _full_tiles():
            _accumulate(tile_rows)
    else:
        _accumulate(tile_rows)

    # ---- epilogue: fold accumulator (+ KL on split 0) into this split's block
    @pl.when(t == nt - 1)
    def _finalize():
        recon_sum = jnp.sum(acc_ref[...])
        row = lax.broadcasted_iota(jnp.int32, (8, 128), 0)
        lane = lax.broadcasted_iota(jnp.int32, (8, 128), 1)
        part_ref[...] = jnp.where((row == 0) & (lane == 0), recon_sum, 0.0)

    @pl.when((t == nt - 1) & (c == 0))
    def _finalize_kl():
        zm = zm_ref[...].astype(jnp.float32)
        zlv = zlv_ref[...].astype(jnp.float32)
        kl2 = jnp.sum(jnp.exp(zlv) + zm * zm - 1.0 - zlv)      # 2 * KL
        row = lax.broadcasted_iota(jnp.int32, (8, 128), 0)
        lane = lax.broadcasted_iota(jnp.int32, (8, 128), 1)
        part_ref[...] = jnp.where((row == 0) & (lane == 1), kl2, part_ref[...])
    # TODO(synk): the torch module logs a warning when kl < 1e-3 (posterior
    # collapse check); host-side logging has no in-kernel equivalent, omitted.


# ----------------------------------------------------------------------------
# Helpers
# ----------------------------------------------------------------------------
def _sublane_quantum(dtype) -> int:
    return {4: 8, 2: 16, 1: 32}.get(jnp.dtype(dtype).itemsize, 8)


def _num_tensorcores() -> int:
    """Best-effort TensorCore count of the attached chip (1 on v5e/v6e)."""
    try:
        dev = jax.devices()[0]
    except Exception:
        return 1
    for attr in ("num_cores", "core_count"):
        val = getattr(dev, attr, None)
        if isinstance(val, int) and 1 <= val <= 8:
            return val
    kind = str(getattr(dev, "device_kind", "")).lower()
    if "v7" in kind or "v4" in kind:
        return 2
    return 1


def _plain_vae_loss(x, x_hat, z_mean, z_logv, sigma_x, beta, likelihood_type):
    """Plain-JAX forward (reference, and fallback for sub-vreg inputs)."""
    xf = x.astype(jnp.float32)
    hf = x_hat.astype(jnp.float32)
    sigma = jnp.asarray(sigma_x, jnp.float32)
    d = z_mean.shape[1]
    axes = tuple(range(1, x.ndim))
    if likelihood_type == 'mse':
        per = jnp.mean((xf - hf) ** 2, axis=axes)
        nll = (0.5 / (sigma * sigma)) * per.sum() * float(d * d)
    else:
        bce = -(xf * jnp.maximum(jnp.log(hf), -100.0)
                + (1.0 - xf) * jnp.maximum(jnp.log(1.0 - hf), -100.0))
        nll = jnp.mean(bce, axis=axes).sum() * float(d * d)
    zm = z_mean.astype(jnp.float32)
    zlv = z_logv.astype(jnp.float32)
    kl = 0.5 * jnp.sum(jnp.exp(zlv) + zm * zm - 1.0 - zlv)
    loss = nll + jnp.float32(beta) * kl
    return loss, nll, kl


# ----------------------------------------------------------------------------
# Wrapper
# ----------------------------------------------------------------------------
def image_vae_loss(x, x_hat, z_mean, z_logv, sigma_x, *,
                   beta: float = 1.0, likelihood_type: str = 'mse',
                   max_tile_bytes: int = 4 * 1024 * 1024,
                   _force_split=None):
    """Pallas implementation of ImageVaeLoss.forward.

    x, x_hat : (B, C, H, W) float32/bfloat16 (NCHW, like the PyTorch module)
    z_mean, z_logv : (B, Dz); sigma_x : scalar.
    Returns (loss, nll, kl) float32 scalars.
    """
    if likelihood_type not in ('mse', 'bce'):
        raise ValueError(f'Unknown likelihood type: {likelihood_type}')
    if x.shape != x_hat.shape:
        raise ValueError('x and x_hat must have the same shape')

    n_per_sample = 1
    for s in x.shape[1:]:
        n_per_sample *= int(s)
    n_total = int(x.shape[0]) * n_per_sample
    d_lat = int(z_mean.shape[1])

    sigma = jnp.asarray(sigma_x, jnp.float32)
    scale = float(d_lat * d_lat) / float(n_per_sample)

    if n_total < 128:
        # Degenerate sub-vreg input: no lane-dense layout possible; plain JAX.
        return _plain_vae_loss(x, x_hat, z_mean, z_logv, sigma, beta,
                               likelihood_type)

    # ---- lane-dense layout: (rows, w_col), w_col a multiple of 128 ----------
    w_col = None
    for w in (4096, 2048, 1024, 512, 256, 128):
        if n_total % w == 0:
            w_col = w
            break
    if w_col is None:
        # numel not a multiple of 128 (rare for image tensors): stream the
        # 128-aligned prefix through the kernel (one HBM copy for the slice --
        # still far cheaper than padding BOTH inputs) and add the small tail
        # with plain jnp below.
        for w in (4096, 2048, 1024, 512, 256, 128):
            if n_total // w >= 1:
                w_col = w
                break
    rows = n_total // w_col
    prefix = rows * w_col
    tail_n = n_total - prefix

    xf = x.reshape(n_total)
    hf = x_hat.reshape(n_total)
    xp = xf if tail_n == 0 else xf[:prefix]
    hp = hf if tail_n == 0 else hf[:prefix]
    x2 = xp.reshape(rows, w_col)      # pure metadata reshape when tail_n == 0
    h2 = hp.reshape(rows, w_col)

    # ---- row-tile size: target ~max_tile_bytes per input per tile -----------
    sub = max(_sublane_quantum(x.dtype), _sublane_quantum(x_hat.dtype))
    itemsize = max(jnp.dtype(x.dtype).itemsize, jnp.dtype(x_hat.dtype).itemsize)
    target_rows = max(sub, (max_tile_bytes // (w_col * itemsize)) // sub * sub)
    if rows <= target_rows:
        tile_rows = rows              # single full-extent tile (always legal)
        n_row_tiles = 1
    else:
        tile_rows = target_rows
        n_row_tiles = -(-rows // tile_rows)
    rows_in_last = rows - (n_row_tiles - 1) * tile_rows
    acc_rows = sub if tile_rows % sub == 0 else 1

    # ---- 2-way core split only on chips with 2 TensorCores ------------------
    if _force_split is not None:
        n_split = max(1, min(int(_force_split), n_row_tiles))
    else:
        n_split = 2 if (_num_tensorcores() >= 2 and n_row_tiles >= 2) else 1
    tiles_per_split = -(-n_row_tiles // n_split)
    needs_skip_guard = (n_split * tiles_per_split != n_row_tiles)

    def xmap(ci, ti):
        gi = ci * tiles_per_split + ti
        if needs_skip_guard:
            # Clamp the over-provisioned last tile of the second split; the
            # kernel skips its contribution.
            gi = jnp.minimum(gi, n_row_tiles - 1)
        return (gi, 0)

    kernel = partial(_vae_loss_kernel,
                     likelihood_type=likelihood_type,
                     n_row_tiles=n_row_tiles,
                     tiles_per_split=tiles_per_split,
                     tile_rows=tile_rows,
                     rows_in_last=rows_in_last,
                     acc_rows=acc_rows,
                     needs_skip_guard=needs_skip_guard)

    parts = pl.pallas_call(
        kernel,
        out_shape=jax.ShapeDtypeStruct((8 * n_split, 128), jnp.float32),
        grid_spec=pltpu.PrefetchScalarGridSpec(
            num_scalar_prefetch=0,
            grid=(n_split, tiles_per_split),
            in_specs=[
                pl.BlockSpec((tile_rows, w_col), xmap),             # x
                pl.BlockSpec((tile_rows, w_col), xmap),             # x_hat
                pl.BlockSpec(z_mean.shape, lambda ci, ti: (0, 0)),  # z_mean
                pl.BlockSpec(z_logv.shape, lambda ci, ti: (0, 0)),  # z_logv
            ],
            out_specs=pl.BlockSpec((8, 128), lambda ci, ti: (ci, 0)),
            scratch_shapes=[pltpu.VMEM((acc_rows, w_col), jnp.float32)],
        ),
        compiler_params=pltpu.CompilerParams(
            dimension_semantics=("parallel", "arbitrary"),
            vmem_limit_bytes=48 * 1024 * 1024),
    )(x2, h2, z_mean, z_logv)

    recon_sum = parts[0, 0]
    for s in range(1, n_split):
        recon_sum = recon_sum + parts[8 * s, 0]
    kl = 0.5 * parts[0, 1]            # KL partial only taken from split 0

    if tail_n:
        xt = xf[prefix:].astype(jnp.float32)
        ht = hf[prefix:].astype(jnp.float32)
        if likelihood_type == 'mse':
            recon_sum = recon_sum + jnp.sum((xt - ht) ** 2)
        else:
            recon_sum = recon_sum + jnp.sum(
                -(xt * jnp.maximum(jnp.log(ht), -100.0)
                  + (1.0 - xt) * jnp.maximum(jnp.log(1.0 - ht), -100.0)))

    # per-sample mean then batch sum == total_sum / n_per_sample (equal counts)
    if likelihood_type == 'mse':
        nll = (0.5 / (sigma * sigma)) * recon_sum * scale
    else:
        nll = recon_sum * scale
    loss = nll + jnp.float32(beta) * kl
    return loss, nll, kl


# ----------------------------------------------------------------------------
# Self-test
# ----------------------------------------------------------------------------
if __name__ == "__main__":
    key = jax.random.PRNGKey(0)
    k = jax.random.split(key, 10)

    def check(got, want, rtol, atol, tag):
        for name, g, w in zip(("loss", "nll", "kl"), got, want):
            assert jnp.allclose(g, w, rtol=rtol, atol=atol), (tag, name, g, w)

    # ---- test 1: small f32, mse, single tile --------------------------------
    B, C, H, W = 2, 4, 16, 16
    Dz = 8
    x = jax.random.uniform(k[0], (B, C, H, W), jnp.float32)
    xh = jax.random.uniform(k[1], (B, C, H, W), jnp.float32)
    zm = jax.random.normal(k[2], (B, Dz), jnp.float32)
    zlv = 0.1 * jax.random.normal(k[3], (B, Dz), jnp.float32)
    sigma_x = jnp.float32(0.5)

    out1 = image_vae_loss(x, xh, zm, zlv, sigma_x, beta=1.0)
    jax.block_until_ready(out1)
    ref1 = _plain_vae_loss(x, xh, zm, zlv, sigma_x, 1.0, 'mse')
    check(out1, ref1, 1e-5, 1e-4, "t1")

    # ---- test 2: bf16 inputs, mse -------------------------------------------
    xb = jax.random.uniform(k[4], (2, 3, 64, 64), jnp.float32).astype(jnp.bfloat16)
    xhb = jax.random.uniform(k[5], (2, 3, 64, 64), jnp.float32).astype(jnp.bfloat16)
    out2 = image_vae_loss(xb, xhb, zm, zlv, sigma_x, beta=0.5)
    jax.block_until_ready(out2)
    ref2 = _plain_vae_loss(xb, xhb, zm, zlv, sigma_x, 0.5, 'mse')
    check(out2, ref2, 1e-4, 1e-3, "t2")

    # ---- test 3: multi-tile grid, ragged last tile, forced 2-way split ------
    x3 = jax.random.uniform(k[6], (3, 3, 40, 128), jnp.float32)
    xh3 = jax.random.uniform(k[7], (3, 3, 40, 128), jnp.float32)
    zm3 = jax.random.normal(k[8], (3, Dz), jnp.float32)
    zlv3 = 0.1 * jax.random.normal(k[9], (3, Dz), jnp.float32)
    out3 = image_vae_loss(x3, xh3, zm3, zlv3, sigma_x, beta=2.0,
                          max_tile_bytes=16 * 1024 * 4, _force_split=2)
    jax.block_until_ready(out3)
    ref3 = _plain_vae_loss(x3, xh3, zm3, zlv3, sigma_x, 2.0, 'mse')
    check(out3, ref3, 1e-5, 1e-4, "t3")

    # ---- test 4: bce likelihood ---------------------------------------------
    xp_ = 0.02 + 0.96 * jax.random.uniform(k[4], (B, C, H, W), jnp.float32)
    hp_ = 0.02 + 0.96 * jax.random.uniform(k[5], (B, C, H, W), jnp.float32)
    out4 = image_vae_loss(xp_, hp_, zm, zlv, sigma_x, beta=1.0,
                          likelihood_type='bce')
    jax.block_until_ready(out4)
    ref4 = _plain_vae_loss(xp_, hp_, zm, zlv, sigma_x, 1.0, 'bce')
    check(out4, ref4, 1e-5, 1e-4, "t4")

    # ---- test 5: numel not a multiple of 128 (prefix + jnp tail path) -------
    x5 = jax.random.uniform(k[6], (2, 3, 5, 7), jnp.float32)
    xh5 = jax.random.uniform(k[7], (2, 3, 5, 7), jnp.float32)
    out5 = image_vae_loss(x5, xh5, zm, zlv, sigma_x, beta=1.0)
    jax.block_until_ready(out5)
    ref5 = _plain_vae_loss(x5, xh5, zm, zlv, sigma_x, 1.0, 'mse')
    check(out5, ref5, 1e-5, 1e-4, "t5")

    print("KERNEL_OK")
</pallas_src>

<mosaic_0001>
module attributes {stable_mosaic.version = 11 : i64} {
  func.func @_vae_loss_kernel(%arg0: i32, %arg1: i32, %arg2: memref<1x2048xf32, #tpu.memory_space<vmem>>, %arg3: memref<1x2048xf32, #tpu.memory_space<vmem>>, %arg4: memref<2x8xf32, #tpu.memory_space<vmem>>, %arg5: memref<2x8xf32, #tpu.memory_space<vmem>>, %arg6: memref<8x128xf32, #tpu.memory_space<vmem>>, %arg7: memref<1x2048xf32, #tpu.memory_space<vmem>>) attributes {dimension_semantics = [#tpu.dimension_semantics<parallel>, #tpu.dimension_semantics<arbitrary>], iteration_bounds = array<i64: 1, 1>, scalar_prefetch = 0 : i64, scratch_operands = 1 : i64, tpu.core_type = #tpu.core_type<tc>, window_params = [{transform_indices = @transform_0, window_bounds = array<i64: 1, 2048>}, {transform_indices = @transform_1, window_bounds = array<i64: 1, 2048>}, {pipeline_mode = #tpu.pipeline_mode<synchronous>, transform_indices = @transform_2, window_bounds = array<i64: 2, 8>}, {pipeline_mode = #tpu.pipeline_mode<synchronous>, transform_indices = @transform_3, window_bounds = array<i64: 2, 8>}, {transform_indices = @transform_4, window_bounds = array<i64: 8, 128>}]} {
    %c0_i32 = arith.constant 0 : i32
    %0 = arith.cmpi eq, %arg1, %c0_i32 : i32
    %1 = arith.extui %0 : i1 to i32
    %c0_i32_0 = arith.constant 0 : i32
    %2 = arith.cmpi ne, %1, %c0_i32_0 : i32
    scf.if %2 {
      %cst_13 = arith.constant 0.000000e+00 : f32
      %20 = vector.broadcast %cst_13 : f32 to vector<1x2048xf32>
      %c0_14 = arith.constant 0 : index
      %c0_15 = arith.constant 0 : index
      %21 = vector.load %arg7[%c0_14, %c0_15] : memref<1x2048xf32, #tpu.memory_space<vmem>>, vector<1x2048xf32>
      tpu.vector_store %arg7[%c0_14, %c0_15], %20 {strides = array<i32>} : memref<1x2048xf32, #tpu.memory_space<vmem>>, vector<1x2048xf32>,
    } else {
    }
    %c0 = arith.constant 0 : index
    %c0_1 = arith.constant 0 : index
    %3 = vector.load %arg2[%c0, %c0_1] : memref<1x2048xf32, #tpu.memory_space<vmem>>, vector<1x2048xf32>
    %c0_2 = arith.constant 0 : index
    %c0_3 = arith.constant 0 : index
    %4 = vector.load %arg3[%c0_2, %c0_3] : memref<1x2048xf32, #tpu.memory_space<vmem>>, vector<1x2048xf32>
    %5 = arith.subf %3, %4 : vector<1x2048xf32>
    %6 = arith.mulf %5, %5 : vector<1x2048xf32>
    %c0_4 = arith.constant 0 : index
    %c0_5 = arith.constant 0 : index
    %7 = vector.load %arg7[%c0_4, %c0_5] : memref<1x2048xf32, #tpu.memory_space<vmem>>, vector<1x2048xf32>
    %cst = arith.constant dense<0.000000e+00> : vector<2048xf32>
    %8 = vector.multi_reduction <add>, %6, %cst [0] : vector<1x2048xf32> to vector<2048xf32>
    %9 = vector.shape_cast %8 : vector<2048xf32> to vector<1x2048xf32>
    %10 = arith.addf %7, %9 : vector<1x2048xf32>
    %c0_6 = arith.constant 0 : index
    %c0_7 = arith.constant 0 : index
    %11 = vector.load %arg7[%c0_6, %c0_7] : memref<1x2048xf32, #tpu.memory_space<vmem>>, vector<1x2048xf32>
    tpu.vector_store %arg7[%c0_6, %c0_7], %10 {strides = array<i32>} : memref<1x2048xf32, #tpu.memory_space<vmem>>, vector<1x2048xf32>,
    %c0_i32_8 = arith.constant 0 : i32
    %12 = arith.cmpi eq, %arg1, %c0_i32_8 : i32
    %13 = arith.extui %12 : i1 to i32
    %c0_i32_9 = arith.constant 0 : i32
    %14 = arith.cmpi ne, %13, %c0_i32_9 : i32
    scf.if %14 {
      %c0_13 = arith.constant 0 : index
      %c0_14 = arith.constant 0 : index
      %20 = vector.load %arg7[%c0_13, %c0_14] : memref<1x2048xf32, #tpu.memory_space<vmem>>, vector<1x2048xf32>
      %21 = vector.shape_cast %20 : vector<1x2048xf32> to vector<1x1x2048xf32>
      %cst_15 = arith.constant dense<0.000000e+00> : vector<1xf32>
      %22 = vector.multi_reduction <add>, %21, %cst_15 [1, 2] : vector<1x1x2048xf32> to vector<1xf32>
      %23 = vector.shape_cast %22 : vector<1xf32> to vector<1x1x1xf32>
      %24 = vector.extract %23[0, 0, 0] : f32 from vector<1x1x1xf32>
      %25 = tpu.iota {dimensions = array<i32: 0>} : vector<8x128xi32>
      %26 = tpu.iota {dimensions = array<i32: 1>} : vector<8x128xi32>
      %c0_i32_16 = arith.constant 0 : i32
      %27 = vector.broadcast %c0_i32_16 : i32 to vector<8x128xi32>
      %28 = arith.cmpi eq, %25, %27 : vector<8x128xi32>
      %c0_i32_17 = arith.constant 0 : i32
      %29 = vector.broadcast %c0_i32_17 : i32 to vector<8x128xi32>
      %30 = arith.cmpi eq, %26, %29 : vector<8x128xi32>
      %31 = arith.andi %28, %30 : vector<8x128xi1>
      %cst_18 = arith.constant 0.000000e+00 : f32
      %32 = vector.broadcast %24 : f32 to vector<8x128xf32>
      %33 = vector.broadcast %cst_18 : f32 to vector<8x128xf32>
      %34 = arith.select %31, %32, %33 : vector<8x128xi1>, vector<8x128xf32>
      %c0_19 = arith.constant 0 : index
      %c0_20 = arith.constant 0 : index
      %35 = vector.load %arg6[%c0_19, %c0_20] : memref<8x128xf32, #tpu.memory_space<vmem>>, vector<8x128xf32>
      tpu.vector_store %arg6[%c0_19, %c0_20], %34 {strides = array<i32>} : memref<8x128xf32, #tpu.memory_space<vmem>>, vector<8x128xf32>,
    } else {
    }
    %c0_i32_10 = arith.constant 0 : i32
    %15 = arith.cmpi eq, %arg1, %c0_i32_10 : i32
    %c0_i32_11 = arith.constant 0 : i32
    %16 = arith.cmpi eq, %arg0, %c0_i32_11 : i32
    %17 = arith.andi %15, %16 : i1
    %18 = arith.extui %17 : i1 to i32
    %c0_i32_12 = arith.constant 0 : i32
    %19 = arith.cmpi ne, %18, %c0_i32_12 : i32
    scf.if %19 {
      %c0_13 = arith.constant 0 : index
      %c0_14 = arith.constant 0 : index
      %20 = vector.load %arg4[%c0_13, %c0_14] : memref<2x8xf32, #tpu.memory_space<vmem>>, vector<2x8xf32>
      %c0_15 = arith.constant 0 : index
      %c0_16 = arith.constant 0 : index
      %21 = vector.load %arg5[%c0_15, %c0_16] : memref<2x8xf32, #tpu.memory_space<vmem>>, vector<2x8xf32>
      %22 = math.exp %21 : vector<2x8xf32>
      %23 = arith.mulf %20, %20 : vector<2x8xf32>
      %24 = arith.addf %22, %23 : vector<2x8xf32>
      %cst_17 = arith.constant 1.000000e+00 : f32
      %25 = vector.broadcast %cst_17 : f32 to vector<2x8xf32>
      %26 = arith.subf %24, %25 : vector<2x8xf32>
      %27 = arith.subf %26, %21 : vector<2x8xf32>
      %28 = vector.shape_cast %27 : vector<2x8xf32> to vector<1x2x8xf32>
      %cst_18 = arith.constant dense<0.000000e+00> : vector<1xf32>
      %29 = vector.multi_reduction <add>, %28, %cst_18 [1, 2] : vector<1x2x8xf32> to vector<1xf32>
      %30 = vector.shape_cast %29 : vector<1xf32> to vector<1x1x1xf32>
      %31 = vector.extract %30[0, 0, 0] : f32 from vector<1x1x1xf32>
      %32 = tpu.iota {dimensions = array<i32: 0>} : vector<8x128xi32>
      %33 = tpu.iota {dimensions = array<i32: 1>} : vector<8x128xi32>
      %c0_i32_19 = arith.constant 0 : i32
      %34 = vector.broadcast %c0_i32_19 : i32 to vector<8x128xi32>
      %35 = arith.cmpi eq, %32, %34 : vector<8x128xi32>
      %c1_i32 = arith.constant 1 : i32
      %36 = vector.broadcast %c1_i32 : i32 to vector<8x128xi32>
      %37 = arith.cmpi eq, %33, %36 : vector<8x128xi32>
      %38 = arith.andi %35, %37 : vector<8x128xi1>
      %c0_20 = arith.constant 0 : index
      %c0_21 = arith.constant 0 : index
      %39 = vector.load %arg6[%c0_20, %c0_21] : memref<8x128xf32, #tpu.memory_space<vmem>>, vector<8x128xf32>
      %40 = vector.broadcast %31 : f32 to vector<8x128xf32>
      %41 = arith.select %38, %40, %39 : vector<8x128xi1>, vector<8x128xf32>
      %c0_22 = arith.constant 0 : index
      %c0_23 = arith.constant 0 : index
      %42 = vector.load %arg6[%c0_22, %c0_23] : memref<8x128xf32, #tpu.memory_space<vmem>>, vector<8x128xf32>
      tpu.vector_store %arg6[%c0_22, %c0_23], %41 {strides = array<i32>} : memref<8x128xf32, #tpu.memory_space<vmem>>, vector<8x128xf32>,
    } else {
    }
    return
  }
  func.func @transform_0(%arg0: i32, %arg1: i32) -> (i32, i32) {
    %c1_i32 = arith.constant 1 : i32
    %0 = arith.muli %arg0, %c1_i32 : i32
    %1 = arith.addi %0, %arg1 : i32
    %c0_i32 = arith.constant 0 : i32
    %c0_i32_0 = arith.constant 0 : i32
    return %1, %c0_i32 : i32, i32
  }
  func.func @transform_1(%arg0: i32, %arg1: i32) -> (i32, i32) {
    %c1_i32 = arith.constant 1 : i32
    %0 = arith.muli %arg0, %c1_i32 : i32
    %1 = arith.addi %0, %arg1 : i32
    %c0_i32 = arith.constant 0 : i32
    %c0_i32_0 = arith.constant 0 : i32
    return %1, %c0_i32 : i32, i32
  }
  func.func @transform_2(%arg0: i32, %arg1: i32) -> (i32, i32) {
    %c0_i32 = arith.constant 0 : i32
    %c0_i32_0 = arith.constant 0 : i32
    %c0_i32_1 = arith.constant 0 : i32
    return %c0_i32, %c0_i32_0 : i32, i32
  }
  func.func @transform_3(%arg0: i32, %arg1: i32) -> (i32, i32) {
    %c0_i32 = arith.constant 0 : i32
    %c0_i32_0 = arith.constant 0 : i32
    %c0_i32_1 = arith.constant 0 : i32
    return %c0_i32, %c0_i32_0 : i32, i32
  }
  func.func @transform_4(%arg0: i32, %arg1: i32) -> (i32, i32) {
    %c0_i32 = arith.constant 0 : i32
    %c0_i32_0 = arith.constant 0 : i32
    return %arg0, %c0_i32 : i32, i32
  }
}

</mosaic_0001>

<llo_original>
// kernel: tpu_custom_call.1
$region0: #{tpu_custom_call.1}
  #allocation0 [shape = 'u32[]', space=smem, size = 0x4, offset = 0x4, fixed_abs, tag = 'smem constant byte address 0x4 - core index']
  #allocation1 [shape = 'u32[144,128]{1,0:T(1,128)}', space=vmem, size = 0x12000, scoped, tag = 'internal scratch']
  #allocation2 [shape = 'f32[1,2048]{1,0:T(1,128)}', space=vmem, size = 0x2000, scoped, tag = 'scratch operand']
  %s0 = inlined_call_operand.hbm [shape: f32[1,2048], index: 0, kind: input, shape index: {}]
  %s1 = inlined_call_operand.hbm [shape: f32[1,2048], index: 1, kind: input, shape index: {}]
  %s2 = inlined_call_operand.vmem [shape: f32[2,8], index: 2, kind: input, shape index: {}]
  %s3 = inlined_call_operand.vmem [shape: f32[2,8], index: 3, kind: input, shape index: {}]
  %s4 = inlined_call_operand.hbm [shape: f32[8,128], index: 4, kind: output, shape index: {}]
  %s5 = sld [smem:[#allocation0]]
  $region46: #{tpu_custom_call.1} parent=0
    _
  %s7 = ssub.s32 1, %s5
  %s8 = scalar_select 0, %s7, %s5
  $region1: #{tpu_custom_call.1} parent=0
    #allocation3 [shape = 'u8[8192]{0}', space=vmem, size = 0x2000, scoped, tag = 'input window, operand 0, single buffered']
    #allocation4 [shape = 's32[1]{0}', space=sflag, size = 0x4, scoped, tag = 'scoped memory for tpu_custom_call.1']
    #allocation5 [shape = 's32[1]{0}', space=sflag, size = 0x4, scoped, tag = 'scoped memory for tpu_custom_call.1']
    #allocation6 [shape = 'u8[8192]{0}', space=vmem, size = 0x2000, scoped, tag = 'input window, operand 1, single buffered']
    #allocation7 [shape = 's32[1]{0}', space=sflag, size = 0x4, scoped, tag = 'scoped memory for tpu_custom_call.1']
    #allocation8 [shape = 'u8[4096]{0}', space=vmem, size = 0x1000, scoped, tag = 'output window, operand 0, single buffered']
    %9 = vsyncpa [#allocation4], 0
    %10 = vsyncpa [#allocation7], 0
    %11 = vsyncpa [#allocation5], 0
    // Predicated region
    $region2: #{tpu_custom_call.1} parent=1 // pred_check
      _
    $region3: #{tpu_custom_call.1} parent=1 // pred_check_branch
      %13 = sbr.rel (0) target = $region5
    $region4: #{tpu_custom_call.1} parent=1 // pred_region
      %s14 = sadd.s32 0, 0
      %s16 = ssub.s32 256, 256
      %17 = vsyncadd [#allocation4], %s16
      %s18 = smul.addr %s14, 16
      %s19 = smul.addr %s18, 16
      %s20 = scalar_lea.hbm %s0, %s19
      %s22 = sshll.u32 [#allocation3], 4
      %s23 = int_to_ptr.vmem [resolvable:$true] %s22
      %25 = dma.hbm_to_vmem [thread:$0]  %s20, 256, %s23, [#allocation4]
    $region5: #{tpu_custom_call.1} parent=1 // pred_fallthru
      _
    // Predicated region
    $region6: #{tpu_custom_call.1} parent=1 // pred_check
      _
    $region7: #{tpu_custom_call.1} parent=1 // pred_check_branch
      %27 = sbr.rel (0) target = $region9
    $region8: #{tpu_custom_call.1} parent=1 // pred_region
      %s28 = sadd.s32 0, 0
      %s30 = ssub.s32 256, 256
      %31 = vsyncadd [#allocation7], %s30
      %s32 = smul.addr %s28, 16
      %s33 = smul.addr %s32, 16
      %s34 = scalar_lea.hbm %s1, %s33
      %s36 = sshll.u32 [#allocation6], 4
      %s37 = int_to_ptr.vmem [resolvable:$true] %s36
      %39 = dma.hbm_to_vmem [thread:$0]  %s34, 256, %s37, [#allocation7]
    $region9: #{tpu_custom_call.1} parent=1 // pred_fallthru
      _
    // Predicated region
    $region10: #{tpu_custom_call.1} parent=1 // pred_check
      _
    $region11: #{tpu_custom_call.1} parent=1 // pred_check_branch
      %41 = sbr.rel (0) target = $region13
    $region12: #{tpu_custom_call.1} parent=1 // pred_region
      _
    $region13: #{tpu_custom_call.1} parent=1 // pred_fallthru
      _
    // Predicated region
    $region14: #{tpu_custom_call.1} parent=1 // pred_check
      _
    $region15: #{tpu_custom_call.1} parent=1 // pred_check_branch
      %43 = sbr.rel (0) target = $region17
    $region16: #{tpu_custom_call.1} parent=1 // pred_region
      _
    $region17: #{tpu_custom_call.1} parent=1 // pred_fallthru
      _
    // Predicated region
    $region18: #{tpu_custom_call.1} parent=1 // pred_check
      _
    $region19: #{tpu_custom_call.1} parent=1 // pred_check_branch
      %45 = sbr.rel (0) target = $region21
    $region20: #{tpu_custom_call.1} parent=1 // pred_region
      %46 = dma.done [#allocation4], 256
    $region21: #{tpu_custom_call.1} parent=1 // pred_fallthru
      _
    // Predicated region
    $region22: #{tpu_custom_call.1} parent=1 // pred_check
      _
    $region23: #{tpu_custom_call.1} parent=1 // pred_check_branch
      %48 = sbr.rel (0) target = $region25
    $region24: #{tpu_custom_call.1} parent=1 // pred_region
      %49 = dma.done [#allocation7], 256
    $region25: #{tpu_custom_call.1} parent=1 // pred_fallthru
      _
    %s50 = sadd.s32 0, 0
    %s51 = sadd.s32 0, 0
    %p52 = scmp.eq.s32.totalorder 0, 0
    // Predicated region
    $region26: #{tpu_custom_call.1} parent=1 // pred_check
      %p53 = pneg %p52
    $region27: #{tpu_custom_call.1} parent=1 // pred_check_branch
      %55 = sbr.rel (%p53) target = $region29
    $region28: #{tpu_custom_call.1} parent=1 // pred_region
      %56 = vst [vmem:[#allocation2] sm:$0xff] 0.0
      %57 = vst [vmem:[#allocation2 + $0x8] sm:$0xff] 0.0
    $region29: #{tpu_custom_call.1} parent=1 // pred_fallthru
      _
    %v58 = vld [vmem:[#allocation3] sm:$0xff]
    %v59 = vld [vmem:[#allocation3 + $0x8] sm:$0xff]
    %v60 = vld [vmem:[#allocation6] sm:$0xff]
    %v61 = vld [vmem:[#allocation6 + $0x8] sm:$0xff]
    %v62 = vsub.f32 %v58, %v60
    %v63 = vsub.f32 %v59, %v61
    %v64 = vmul.f32 %v62, %v62
    %v65 = vmul.f32 %v63, %v63
    %v66 = vld [vmem:[#allocation2] sm:$0xff]
    %v67 = vld [vmem:[#allocation2 + $0x8] sm:$0xff]
    %v68 = vadd.f32 %v64, 0.0
    %v69 = vadd.f32 %v65, 0.0
    %v70 = vadd.f32 %v66, %v68
    %v71 = vadd.f32 %v67, %v69
    %72 = vst [vmem:[#allocation2] sm:$0xff] %v70
    %73 = vst [vmem:[#allocation2 + $0x8] sm:$0xff] %v71
    // Predicated region
    $region30: #{tpu_custom_call.1} parent=1 // pred_check
      %p74 = pneg %p52
    $region31: #{tpu_custom_call.1} parent=1 // pred_check_branch
      %76 = sbr.rel (%p74) target = $region33
    $region32: #{tpu_custom_call.1} parent=1 // pred_region
      %v77 = vld [vmem:[#allocation2] sm:$0xff]
      %v78 = vld [vmem:[#allocation2 + $0x8] sm:$0xff]
      %v81 = vlaneseq
      %v82 = vshrl.u32 %v81, 7
      %v83 = vsub.s32 0, %v82
      %v84 = vrot.slane %v77, %v83
      %v85 = vlaneseq
      %v86 = vshrl.u32 %v85, 7
      %v87 = vsub.s32 1, %v86
      %v88 = vrot.slane %v77, %v87
      %v89 = vlaneseq
      %v90 = vshrl.u32 %v89, 7
      %v91 = vsub.s32 2, %v90
      %v92 = vrot.slane %v77, %v91
      %v93 = vlaneseq
      %v94 = vshrl.u32 %v93, 7
      %v95 = vsub.s32 3, %v94
      %v96 = vrot.slane %v77, %v95
      %v97 = vlaneseq
      %v98 = vshrl.u32 %v97, 7
      %v99 = vsub.s32 4, %v98
      %v100 = vrot.slane %v77, %v99
      %v101 = vlaneseq
      %v102 = vshrl.u32 %v101, 7
      %v103 = vsub.s32 5, %v102
      %v104 = vrot.slane %v77, %v103
      %v105 = vlaneseq
      %v106 = vshrl.u32 %v105, 7
      %v107 = vsub.s32 6, %v106
      %v108 = vrot.slane %v77, %v107
      %v109 = vlaneseq
      %v110 = vshrl.u32 %v109, 7
      %v111 = vsub.s32 7, %v110
      %v112 = vrot.slane %v77, %v111
      %v113 = vlaneseq
      %v114 = vshrl.u32 %v113, 7
      %v115 = vsub.s32 0, %v114
      %v116 = vrot.slane %v78, %v115
      %v117 = vlaneseq
      %v118 = vshrl.u32 %v117, 7
      %v119 = vsub.s32 1, %v118
      %v120 = vrot.slane %v78, %v119
      %v121 = vlaneseq
      %v122 = vshrl.u32 %v121, 7
      %v123 = vsub.s32 2, %v122
      %v124 = vrot.slane %v78, %v123
      %v125 = vlaneseq
      %v126 = vshrl.u32 %v125, 7
      %v127 = vsub.s32 3, %v126
      %v128 = vrot.slane %v78, %v127
      %v129 = vlaneseq
      %v130 = vshrl.u32 %v129, 7
      %v131 = vsub.s32 4, %v130
      %v132 = vrot.slane %v78, %v131
      %v133 = vlaneseq
      %v134 = vshrl.u32 %v133, 7
      %v135 = vsub.s32 5, %v134
      %v136 = vrot.slane %v78, %v135
      %v137 = vlaneseq
      %v138 = vshrl.u32 %v137, 7
      %v139 = vsub.s32 6, %v138
      %v140 = vrot.slane %v78, %v139
      %v141 = vlaneseq
      %v142 = vshrl.u32 %v141, 7
      %v143 = vsub.s32 7, %v142
      %v144 = vrot.slane %v78, %v143
      %vm161 = vcmask 1040384
      %v162 = vsel %vm161, %v84, 0.0
      %v163 = vsel %vm161, %v88, 0.0
      %v164 = vadd.f32 %v162, %v163
      %v165 = vsel %vm161, %v92, 0.0
      %v166 = vadd.f32 %v164, %v165
      %v167 = vsel %vm161, %v96, 0.0
      %v168 = vadd.f32 %v166, %v167
      %v169 = vsel %vm161, %v100, 0.0
      %v170 = vadd.f32 %v168, %v169
      %v171 = vsel %vm161, %v104, 0.0
      %v172 = vadd.f32 %v170, %v171
      %v173 = vsel %vm161, %v108, 0.0
      %v174 = vadd.f32 %v172, %v173
      %v175 = vsel %vm161, %v112, 0.0
      %v176 = vadd.f32 %v174, %v175
      %v177 = vsel %vm161, %v116, 0.0
      %v178 = vadd.f32 %v176, %v177
      %v179 = vsel %vm161, %v120, 0.0
      %v180 = vadd.f32 %v178, %v179
      %v181 = vsel %vm161, %v124, 0.0
      %v182 = vadd.f32 %v180, %v181
      %v183 = vsel %vm161, %v128, 0.0
      %v184 = vadd.f32 %v182, %v183
      %v185 = vsel %vm161, %v132, 0.0
      %v186 = vadd.f32 %v184, %v185
      %v187 = vsel %vm161, %v136, 0.0
      %v188 = vadd.f32 %v186, %v187
      %v189 = vsel %vm161, %v140, 0.0
      %v190 = vadd.f32 %v188, %v189
      %v191 = vsel %vm161, %v144, 0.0
      %v192 = vadd.f32 %v190, %v191
      %193 = vadd.xlane.f32.xlu0 %v192
      %v194 = vpop.xlane.xlu0 %193
      %v195 = vrot.slane %v194, 4
      %v196 = vadd.f32 %v194, %v195
      %v197 = vrot.slane %v196, 2
      %v198 = vadd.f32 %v196, %v197
      %v199 = vrot.slane %v198, 1
      %v200 = vadd.f32 %v198, %v199
      %s201 = vtos %v200
      %v202 = vlaneseq
      %v203 = vshrl.u32 %v202, 7
      %v204 = vlaneseq
      %v205 = vand.u32 %v204, 127
      %vm206 = vcmp.eq.s32.totalorder %v203, 0
      %vm207 = vcmp.eq.s32.totalorder %v205, 0
      %vm208 = vmand %vm206, %vm207
      %v209 = vstv %s201
      %v210 = vsel %vm208, %v209, 0.0
      %211 = vst [vmem:[#allocation8] sm:$0xff] %v210
    $region33: #{tpu_custom_call.1} parent=1 // pred_fallthru
      _
    %p212 = scmp.eq.s32.totalorder 0, 0
    %p213 = pnand %p52, %p212
    %p214 = pneg %p213
    // Predicated region
    $region34: #{tpu_custom_call.1} parent=1 // pred_check
      _
    $region35: #{tpu_custom_call.1} parent=1 // pred_check_branch
      %216 = sbr.rel (%p213) target = $region37
    $region36: #{tpu_custom_call.1} parent=1 // pred_region
      %v217 = vld [vmem:[%s2] sm:$0x3]
      %v218 = vld [vmem:[%s3] sm:$0x3]
      %v219 = vmul.f32 %v218, 1.442695
      %v220 = vpow.pop %v219
      %v221 = vmul.f32 %v217, %v217
      %v222 = vadd.f32 %v220, %v221
      %v223 = vsub.f32 %v222, 1.0
      %v224 = vsub.f32 %v223, %v218
      %vm225 = vcmask 58368
      %v226 = vsel %vm225, %v224, 0.0
      %227 = vadd.xlane.f32.xlu0 %v226
      %v228 = vpop.xlane.xlu0 %227
      %v229 = vrot.slane %v228, 4
      %v230 = vadd.f32 %v228, %v229
      %v231 = vrot.slane %v230, 2
      %v232 = vadd.f32 %v230, %v231
      %v233 = vrot.slane %v232, 1
      %v234 = vadd.f32 %v232, %v233
      %s235 = vtos %v234
      %v236 = vlaneseq
      %v237 = vshrl.u32 %v236, 7
      %v238 = vlaneseq
      %v239 = vand.u32 %v238, 127
      %vm240 = vcmp.eq.s32.totalorder %v237, 0
      %vm241 = vcmp.eq.s32.totalorder %v239, 1
      %vm242 = vmand %vm240, %vm241
      %v243 = vld [vmem:[#allocation8] sm:$0xff]
      %v244 = vstv %s235
      %v245 = vsel %vm242, %v244, %v243
      %246 = vst [vmem:[#allocation8] sm:$0xff] %v245
    $region37: #{tpu_custom_call.1} parent=1 // pred_fallthru
      _
    // Predicated region
    $region38: #{tpu_custom_call.1} parent=1 // pred_check
      _
    $region39: #{tpu_custom_call.1} parent=1 // pred_check_branch
      %248 = sbr.rel (0) target = $region41
    $region40: #{tpu_custom_call.1} parent=1 // pred_region
      %s250 = ssub.s32 128, 128
      %251 = vsyncadd [#allocation5], %s250
      %s253 = sshll.u32 [#allocation8], 4
      %s254 = int_to_ptr.vmem [resolvable:$true] %s253
      %256 = dma.vmem_to_hbm [thread:$0]  %s254, 128, %s4, [#allocation5]
    $region41: #{tpu_custom_call.1} parent=1 // pred_fallthru
      _
    // Predicated region
    $region42: #{tpu_custom_call.1} parent=1 // pred_check
      _
    $region43: #{tpu_custom_call.1} parent=1 // pred_check_branch
      %258 = sbr.rel (0) target = $region45
    $region44: #{tpu_custom_call.1} parent=1 // pred_region
      %259 = dma.done [#allocation5], 128
    $region45: #{tpu_custom_call.1} parent=1 // pred_fallthru
      _
    %260 = vsyncpa [#allocation4], 1
    %261 = vsyncpa [#allocation7], 1
    %262 = vsyncpa [#allocation5], 1

</llo_original>
